<compile_context>
chip_gen: v7x
topology: tpu7x:2x2x1
jax: 0.10.0
libtpu: 0.0.40
codegen_flags: <defaults>
</compile_context>

<pallas_src>
import jax
import jax.numpy as jnp
from jax.experimental import pallas as pl
from jax.experimental.pallas import tpu as pltpu


def _round_up(x, m):
    return ((x + m - 1) // m) * m


def qnet_kernel(scal_ref,                 # SMEM (3,): [beta2, beta3, fc_bias]
                node_ref, agg_ref,        # VMEM (TBp, LW) lane-packed rows
                s_agg_ref, s_node_ref,    # VMEM (LW, PACK) weight-folded selectors
                out_ref):                 # VMEM (TBp, PACK)
    beta2 = scal_ref[0]
    beta3 = scal_ref[1]
    bias = scal_ref[2]
    # VPU: scale + relu.  Betas stay inside the relu (they are trainable and
    # may be negative) -> exact PyTorch semantics.
    h_agg = jnp.maximum(beta2 * agg_ref[...], 0.0)      # (TBp, LW)
    h_node = jnp.maximum(beta3 * node_ref[...], 0.0)    # (TBp, LW)
    # Otherwise-idle MXU performs the weighted 32-lane segmented reduction:
    # selector column j carries the fc weights for packed-slot j's lanes and
    # zeros elsewhere (block-diagonal), so rows cannot contaminate each other.
    q = (jnp.dot(h_agg, s_agg_ref[...], preferred_element_type=jnp.float32)
         + jnp.dot(h_node, s_node_ref[...], preferred_element_type=jnp.float32))
    out_ref[...] = q + bias


def qnet_forward(node_embed, agg_embed, params, *, block_b=8192):
    """QNet.forward. params: beta2 (1,), beta3 (1,), fc_w (1, 2D), fc_b (1,)."""
    B, D = node_embed.shape
    assert agg_embed.shape == (B, D)

    # Lane packing: PACK consecutive batch rows per 128-lane vreg row.
    pack = 128 // D if (D <= 128 and 128 % D == 0) else 1
    lw = pack * D

    b_pk = _round_up(B, pack)
    if b_pk != B:
        # Pad only to the packing factor (<= pack-1 rows), never to the tile;
        # ragged last grid blocks are handled by Pallas block masking.
        pad = ((0, b_pk - B), (0, 0))
        node_embed = jnp.pad(node_embed, pad)
        agg_embed = jnp.pad(agg_embed, pad)
    bp = b_pk // pack
    node_p = node_embed.reshape(bp, lw)    # free: row-major contiguous
    agg_p = agg_embed.reshape(bp, lw)

    # Weight-folded block-diagonal selectors, rebuilt from fc_w every call so
    # they can never go stale w.r.t. the trained weight.  cat order is
    # [agg, node], so the first D columns of fc_w act on agg.
    fc_w = params["fc_w"].astype(jnp.float32)            # (1, 2D)
    w_agg = fc_w[0, :D]
    w_node = fc_w[0, D:]
    lane = jnp.arange(lw)
    onehot = (lane[:, None] // D == jnp.arange(pack)[None, :]).astype(jnp.float32)
    s_agg = onehot * w_agg[lane % D][:, None]            # (LW, PACK)
    s_node = onehot * w_node[lane % D][:, None]          # (LW, PACK)

    scal = jnp.concatenate([params["beta2"], params["beta3"],
                            params["fc_b"]]).astype(jnp.float32)   # (3,)

    # Batch tile in packed rows: large tiles amortize the ~0.35us per-step
    # overhead; cap so large batches get >= 2 grid steps (the batch axis is
    # the only "parallel" axis, so both v7x TensorCores need work).
    max_tbp = max(8, _round_up(max(block_b, pack) // pack, 8))
    if bp <= 64:
        tbp = bp                       # single block covering the full array
    else:
        tbp = min(max_tbp, _round_up(pl.cdiv(bp, 2), 8))
    grid = (pl.cdiv(bp, tbp),)
    # VMEM: 2 inputs * 2 buffers * tbp*lw*4B <= 4 MiB at the defaults ->
    # comfortably inside the 16/32/32 MiB scoped limits on v5e/v6e/v7x.

    smem = pl.BlockSpec(memory_space=pltpu.MemorySpace.SMEM)
    out = pl.pallas_call(
        qnet_kernel,
        out_shape=jax.ShapeDtypeStruct((bp, pack), jnp.float32),
        grid=grid,
        in_specs=[smem,                                        # [b2, b3, bias]
                  pl.BlockSpec((tbp, lw), lambda i: (i, 0)),   # node (packed)
                  pl.BlockSpec((tbp, lw), lambda i: (i, 0)),   # agg  (packed)
                  pl.BlockSpec((lw, pack), lambda i: (0, 0)),  # s_agg
                  pl.BlockSpec((lw, pack), lambda i: (0, 0))], # s_node
        out_specs=pl.BlockSpec((tbp, pack), lambda i: (i, 0)),
        compiler_params=pltpu.CompilerParams(
            dimension_semantics=("parallel",)),                # v7x: 2 TCs share batch
    )(scal, node_p, agg_p, s_agg, s_node)

    # (bp, pack) -> (B, 1): free contiguous reshape, drop padded rows.
    q = out.reshape(b_pk, 1)
    return q[:B] if b_pk != B else q


def init_params(key, embed_dim=32):
    k1, k2, k3, k4, k5 = jax.random.split(key, 5)
    # torch.rand -> U[0, 1)
    beta1 = jax.random.uniform(k1, (embed_dim, 1), jnp.float32)  # unused in forward
    beta2 = jax.random.uniform(k2, (1,), jnp.float32)
    beta3 = jax.random.uniform(k3, (1,), jnp.float32)
    # nn.Linear(2D, 1): weight (1, 2D) torch layout, bias (1,)
    fan_in = 2 * embed_dim
    bound = 1.0 / jnp.sqrt(fan_in)
    fc_w = jax.random.uniform(k4, (1, fan_in), jnp.float32, -bound, bound)
    fc_b = jax.random.uniform(k5, (1,), jnp.float32, -bound, bound)
    return {"beta1": beta1, "beta2": beta2, "beta3": beta3,
            "fc_w": fc_w, "fc_b": fc_b}


def qnet_reference(node_embed, agg_embed, params):
    scaled_agg = params["beta2"] * agg_embed
    scaled_node = params["beta3"] * node_embed
    combined = jnp.concatenate([scaled_agg, scaled_node], axis=1)
    return jnp.maximum(combined, 0.0) @ params["fc_w"].T + params["fc_b"]


if __name__ == "__main__":
    embed_dim = 32
    batch = 2

    key = jax.random.PRNGKey(0)
    kp, kn, ka = jax.random.split(key, 3)
    params = init_params(kp, embed_dim)
    node_embed = jax.random.normal(kn, (batch, embed_dim), jnp.float32)
    agg_embed = jax.random.normal(ka, (batch, embed_dim), jnp.float32)

    # Toy shape from the module (B=2, D=32): packed into one (1, 128) block.
    q = qnet_forward(node_embed, agg_embed, params)
    jax.block_until_ready(q)
    q_ref = qnet_reference(node_embed, agg_embed, params)
    assert q.shape == (batch, 1)
    assert jnp.allclose(q, q_ref, atol=1e-5, rtol=1e-5), (q, q_ref)

    # Larger batches: multi-step grid, ragged last block, pad-to-pack path.
    for batch2, blk in ((300, 128), (258, 8192)):
        kn2, ka2 = jax.random.split(jax.random.PRNGKey(batch2), 2)
        node2 = jax.random.normal(kn2, (batch2, embed_dim), jnp.float32)
        agg2 = jax.random.normal(ka2, (batch2, embed_dim), jnp.float32)
        q2 = qnet_forward(node2, agg2, params, block_b=blk)
        jax.block_until_ready(q2)
        q2_ref = qnet_reference(node2, agg2, params)
        assert q2.shape == (batch2, 1)
        assert jnp.allclose(q2, q2_ref, atol=1e-5, rtol=1e-5)

    print("KERNEL_OK")
</pallas_src>

<mosaic_0001>
module attributes {stable_mosaic.version = 11 : i64} {
  func.func @qnet_kernel(%arg0: i32, %arg1: memref<3xf32, #tpu.memory_space<smem>>, %arg2: memref<1x128xf32, #tpu.memory_space<vmem>>, %arg3: memref<1x128xf32, #tpu.memory_space<vmem>>, %arg4: memref<128x4xf32, #tpu.memory_space<vmem>>, %arg5: memref<128x4xf32, #tpu.memory_space<vmem>>, %arg6: memref<1x4xf32, #tpu.memory_space<vmem>>) attributes {dimension_semantics = [#tpu.dimension_semantics<parallel>], iteration_bounds = array<i64: 1>, scalar_prefetch = 0 : i64, scratch_operands = 0 : i64, tpu.core_type = #tpu.core_type<tc>, window_params = [{transform_indices = @transform_0, window_bounds = array<i64: 3>}, {transform_indices = @transform_1, window_bounds = array<i64: 1, 128>}, {transform_indices = @transform_2, window_bounds = array<i64: 1, 128>}, {pipeline_mode = #tpu.pipeline_mode<synchronous>, transform_indices = @transform_3, window_bounds = array<i64: 128, 4>}, {pipeline_mode = #tpu.pipeline_mode<synchronous>, transform_indices = @transform_4, window_bounds = array<i64: 128, 4>}, {transform_indices = @transform_5, window_bounds = array<i64: 1, 4>}]} {
    %c0 = arith.constant 0 : index
    %0 = memref.load %arg1[%c0] : memref<3xf32, #tpu.memory_space<smem>>
    %c1 = arith.constant 1 : index
    %1 = memref.load %arg1[%c1] : memref<3xf32, #tpu.memory_space<smem>>
    %c2 = arith.constant 2 : index
    %2 = memref.load %arg1[%c2] : memref<3xf32, #tpu.memory_space<smem>>
    %c0_0 = arith.constant 0 : index
    %c0_1 = arith.constant 0 : index
    %3 = vector.load %arg3[%c0_0, %c0_1] : memref<1x128xf32, #tpu.memory_space<vmem>>, vector<1x128xf32>
    %4 = vector.broadcast %0 : f32 to vector<1x128xf32>
    %5 = arith.mulf %4, %3 : vector<1x128xf32>
    %cst = arith.constant 0.000000e+00 : f32
    %6 = vector.broadcast %cst : f32 to vector<1x128xf32>
    %7 = arith.maximumf %5, %6 : vector<1x128xf32>
    %c0_2 = arith.constant 0 : index
    %c0_3 = arith.constant 0 : index
    %8 = vector.load %arg2[%c0_2, %c0_3] : memref<1x128xf32, #tpu.memory_space<vmem>>, vector<1x128xf32>
    %9 = vector.broadcast %1 : f32 to vector<1x128xf32>
    %10 = arith.mulf %9, %8 : vector<1x128xf32>
    %cst_4 = arith.constant 0.000000e+00 : f32
    %11 = vector.broadcast %cst_4 : f32 to vector<1x128xf32>
    %12 = arith.maximumf %10, %11 : vector<1x128xf32>
    %c0_5 = arith.constant 0 : index
    %c0_6 = arith.constant 0 : index
    %13 = vector.load %arg4[%c0_5, %c0_6] : memref<128x4xf32, #tpu.memory_space<vmem>>, vector<128x4xf32>
    %cst_7 = arith.constant dense<0.000000e+00> : vector<1x4xf32>
    %14 = tpu.matmul %7, %13, %cst_7 {dimension_numbers = #tpu.dot_dimension_numbers<[1], [0], [0], [1], [0, 0, 1, 1], [], []>} : vector<1x128xf32>, vector<128x4xf32>, vector<1x4xf32> -> vector<1x4xf32>
    %c0_8 = arith.constant 0 : index
    %c0_9 = arith.constant 0 : index
    %15 = vector.load %arg5[%c0_8, %c0_9] : memref<128x4xf32, #tpu.memory_space<vmem>>, vector<128x4xf32>
    %cst_10 = arith.constant dense<0.000000e+00> : vector<1x4xf32>
    %16 = tpu.matmul %12, %15, %cst_10 {dimension_numbers = #tpu.dot_dimension_numbers<[1], [0], [0], [1], [0, 0, 1, 1], [], []>} : vector<1x128xf32>, vector<128x4xf32>, vector<1x4xf32> -> vector<1x4xf32>
    %17 = arith.addf %14, %16 : vector<1x4xf32>
    %18 = vector.broadcast %2 : f32 to vector<1x4xf32>
    %19 = arith.addf %17, %18 : vector<1x4xf32>
    %c0_11 = arith.constant 0 : index
    %c0_12 = arith.constant 0 : index
    %20 = vector.load %arg6[%c0_11, %c0_12] : memref<1x4xf32, #tpu.memory_space<vmem>>, vector<1x4xf32>
    tpu.vector_store %arg6[%c0_11, %c0_12], %19 {strides = array<i32>} : memref<1x4xf32, #tpu.memory_space<vmem>>, vector<1x4xf32>,
    return
  }
  func.func @transform_0(%arg0: i32) -> i32 {
    %c0_i32 = arith.constant 0 : i32
    %c0_i32_0 = arith.constant 0 : i32
    return %c0_i32 : i32
  }
  func.func @transform_1(%arg0: i32) -> (i32, i32) {
    %c0_i32 = arith.constant 0 : i32
    %c0_i32_0 = arith.constant 0 : i32
    return %arg0, %c0_i32 : i32, i32
  }
  func.func @transform_2(%arg0: i32) -> (i32, i32) {
    %c0_i32 = arith.constant 0 : i32
    %c0_i32_0 = arith.constant 0 : i32
    return %arg0, %c0_i32 : i32, i32
  }
  func.func @transform_3(%arg0: i32) -> (i32, i32) {
    %c0_i32 = arith.constant 0 : i32
    %c0_i32_0 = arith.constant 0 : i32
    %c0_i32_1 = arith.constant 0 : i32
    return %c0_i32, %c0_i32_0 : i32, i32
  }
  func.func @transform_4(%arg0: i32) -> (i32, i32) {
    %c0_i32 = arith.constant 0 : i32
    %c0_i32_0 = arith.constant 0 : i32
    %c0_i32_1 = arith.constant 0 : i32
    return %c0_i32, %c0_i32_0 : i32, i32
  }
  func.func @transform_5(%arg0: i32) -> (i32, i32) {
    %c0_i32 = arith.constant 0 : i32
    %c0_i32_0 = arith.constant 0 : i32
    return %arg0, %c0_i32 : i32, i32
  }
}

</mosaic_0001>

<llo_original>
// kernel: tpu_custom_call.1
$region0: #{tpu_custom_call.1}
  #allocation0 [shape = 'u32[]', space=smem, size = 0x4, offset = 0x4, fixed_abs, tag = 'smem constant byte address 0x4 - core index']
  #allocation1 [shape = 'u32[144,128]{1,0:T(1,128)}', space=vmem, size = 0x12000, scoped, tag = 'internal scratch']
  %s0 = inlined_call_operand.vmem [shape: f32[3], index: 0, kind: input, shape index: {}]
  %s1 = inlined_call_operand.vmem [shape: f32[1,128], index: 1, kind: input, shape index: {}]
  %s2 = inlined_call_operand.vmem [shape: f32[1,128], index: 2, kind: input, shape index: {}]
  %s3 = inlined_call_operand.vmem [shape: f32[128,4], index: 3, kind: input, shape index: {}]
  %s4 = inlined_call_operand.vmem [shape: f32[128,4], index: 4, kind: input, shape index: {}]
  %s5 = inlined_call_operand.hbm [shape: f32[1,4], index: 5, kind: output, shape index: {}]
  %s6 = sld [smem:[#allocation0]]
  $region34: #{tpu_custom_call.1} parent=0
    _
  %s8 = ssub.s32 1, %s6
  %s9 = scalar_select 0, %s8, %s6
  $region1: #{tpu_custom_call.1} parent=0
    #allocation2 [shape = 'u8[512]{0}', space=smem, size = 0x200, scoped, tag = 'input window, operand 0, single buffered']
    #allocation3 [shape = 's32[1]{0}', space=sflag, size = 0x4, scoped, tag = 'scoped memory for tpu_custom_call.1']
    #allocation4 [shape = 's32[1]{0}', space=sflag, size = 0x4, scoped, tag = 'scoped memory for tpu_custom_call.1']
    #allocation5 [shape = 'u8[512]{0}', space=vmem, size = 0x400, scoped, tag = 'output window, operand 0, single buffered']
    %10 = vsyncpa [#allocation4], 0
    %11 = vsyncpa [#allocation3], 0
    // Predicated region
    $region2: #{tpu_custom_call.1} parent=1 // pred_check
      _
    $region3: #{tpu_custom_call.1} parent=1 // pred_check_branch
      %13 = sbr.rel (0) target = $region5
    $region4: #{tpu_custom_call.1} parent=1 // pred_region
      %s15 = ssub.s32 16, 16
      %16 = vsyncadd [#allocation4], %s15
      %s18 = sshll.u32 %s0, 4
      %s19 = int_to_ptr.vmem [resolvable:$true] %s18
      %21 = dma.vmem_to_smem %s19, 16, [#allocation2], [#allocation4]
    $region5: #{tpu_custom_call.1} parent=1 // pred_fallthru
      _
    // Predicated region
    $region6: #{tpu_custom_call.1} parent=1 // pred_check
      _
    $region7: #{tpu_custom_call.1} parent=1 // pred_check_branch
      %23 = sbr.rel (0) target = $region9
    $region8: #{tpu_custom_call.1} parent=1 // pred_region
      _
    $region9: #{tpu_custom_call.1} parent=1 // pred_fallthru
      _
    // Predicated region
    $region10: #{tpu_custom_call.1} parent=1 // pred_check
      _
    $region11: #{tpu_custom_call.1} parent=1 // pred_check_branch
      %25 = sbr.rel (0) target = $region13
    $region12: #{tpu_custom_call.1} parent=1 // pred_region
      _
    $region13: #{tpu_custom_call.1} parent=1 // pred_fallthru
      _
    // Predicated region
    $region14: #{tpu_custom_call.1} parent=1 // pred_check
      _
    $region15: #{tpu_custom_call.1} parent=1 // pred_check_branch
      %27 = sbr.rel (0) target = $region17
    $region16: #{tpu_custom_call.1} parent=1 // pred_region
      _
    $region17: #{tpu_custom_call.1} parent=1 // pred_fallthru
      _
    // Predicated region
    $region18: #{tpu_custom_call.1} parent=1 // pred_check
      _
    $region19: #{tpu_custom_call.1} parent=1 // pred_check_branch
      %29 = sbr.rel (0) target = $region21
    $region20: #{tpu_custom_call.1} parent=1 // pred_region
      _
    $region21: #{tpu_custom_call.1} parent=1 // pred_fallthru
      _
    // Predicated region
    $region22: #{tpu_custom_call.1} parent=1 // pred_check
      _
    $region23: #{tpu_custom_call.1} parent=1 // pred_check_branch
      %31 = sbr.rel (0) target = $region25
    $region24: #{tpu_custom_call.1} parent=1 // pred_region
      %32 = dma.done [#allocation4], 16
    $region25: #{tpu_custom_call.1} parent=1 // pred_fallthru
      _
    %33 = sfence
    %s34 = sld [smem:[#allocation2]]
    %s35 = sld [smem:[#allocation2 + $0x1]]
    %s36 = sld [smem:[#allocation2 + $0x2]]
    %v37 = vld [vmem:[%s2] sm:$0x1]
    %v38 = vstv %s34
    %v39 = vmul.f32 %v38, %v37
    %v40 = vmax.f32 %v39, 0.0
    %v41 = vld [vmem:[%s1] sm:$0x1]
    %v42 = vstv %s35
    %v43 = vmul.f32 %v42, %v41
    %v44 = vmax.f32 %v43, 0.0
    %v45 = vld [vmem:[%s3] sm:$0xff]
    %v46 = vld [vmem:[%s3 + $0x8] sm:$0xff]
    %v47 = vld [vmem:[%s3 + $0x10] sm:$0xff]
    %v48 = vld [vmem:[%s3 + $0x18] sm:$0xff]
    %v49 = vld [vmem:[%s3 + $0x20] sm:$0xff]
    %v50 = vld [vmem:[%s3 + $0x28] sm:$0xff]
    %v51 = vld [vmem:[%s3 + $0x30] sm:$0xff]
    %v52 = vld [vmem:[%s3 + $0x38] sm:$0xff]
    %v53 = vld [vmem:[%s3 + $0x40] sm:$0xff]
    %v54 = vld [vmem:[%s3 + $0x48] sm:$0xff]
    %v55 = vld [vmem:[%s3 + $0x50] sm:$0xff]
    %v56 = vld [vmem:[%s3 + $0x58] sm:$0xff]
    %v57 = vld [vmem:[%s3 + $0x60] sm:$0xff]
    %v58 = vld [vmem:[%s3 + $0x68] sm:$0xff]
    %v59 = vld [vmem:[%s3 + $0x70] sm:$0xff]
    %v60 = vld [vmem:[%s3 + $0x78] sm:$0xff]
    %v61 = vld [vmem:[%s4] sm:$0xff]
    %v62 = vld [vmem:[%s4 + $0x8] sm:$0xff]
    %v63 = vld [vmem:[%s4 + $0x10] sm:$0xff]
    %v64 = vld [vmem:[%s4 + $0x18] sm:$0xff]
    %v65 = vld [vmem:[%s4 + $0x20] sm:$0xff]
    %v66 = vld [vmem:[%s4 + $0x28] sm:$0xff]
    %v67 = vld [vmem:[%s4 + $0x30] sm:$0xff]
    %v68 = vld [vmem:[%s4 + $0x38] sm:$0xff]
    %v69 = vld [vmem:[%s4 + $0x40] sm:$0xff]
    %v70 = vld [vmem:[%s4 + $0x48] sm:$0xff]
    %v71 = vld [vmem:[%s4 + $0x50] sm:$0xff]
    %v72 = vld [vmem:[%s4 + $0x58] sm:$0xff]
    %v73 = vld [vmem:[%s4 + $0x60] sm:$0xff]
    %v74 = vld [vmem:[%s4 + $0x68] sm:$0xff]
    %v75 = vld [vmem:[%s4 + $0x70] sm:$0xff]
    %v76 = vld [vmem:[%s4 + $0x78] sm:$0xff]
    %77 = vmatprep.subr.mxu0 0.0
    %78 = vmatpush1.msra.mxu0 %v61
    %79 = vmatprep.subr.mxu0 0.0
    %80 = vmatpush1.msra.mxu0 %v62
    %81 = vmatprep.subr.mxu0 0.0
    %82 = vmatpush1.msra.mxu0 %v63
    %83 = vmatprep.subr.mxu0 0.0
    %84 = vmatpush1.msra.mxu0 %v64
    %85 = vmatprep.subr.mxu0 0.0
    %86 = vmatpush1.msra.mxu0 %v65
    %87 = vmatprep.subr.mxu0 0.0
    %88 = vmatpush1.msra.mxu0 %v66
    %89 = vmatprep.subr.mxu0 0.0
    %90 = vmatpush1.msra.mxu0 %v67
    %91 = vmatprep.subr.mxu0 0.0
    %92 = vmatpush1.msra.mxu0 %v68
    %93 = vmatprep.subr.mxu0 0.0
    %94 = vmatpush1.msra.mxu0 %v69
    %95 = vmatprep.subr.mxu0 0.0
    %96 = vmatpush1.msra.mxu0 %v70
    %97 = vmatprep.subr.mxu0 0.0
    %98 = vmatpush1.msra.mxu0 %v71
    %99 = vmatprep.subr.mxu0 0.0
    %100 = vmatpush1.msra.mxu0 %v72
    %101 = vmatprep.subr.mxu0 0.0
    %102 = vmatpush1.msra.mxu0 %v73
    %103 = vmatprep.subr.mxu0 0.0
    %104 = vmatpush1.msra.mxu0 %v74
    %105 = vmatprep.subr.mxu0 0.0
    %106 = vmatpush1.msra.mxu0 %v75
    %107 = vmatprep.subr.mxu0 0.0
    %108 = vmatpush1.msra.mxu0 %v76
    %109 = vmatprep.subr.mxu0 0.0
    %110 = vmatpush1.msra.mxu0 0.0
    %111 = vmatprep.subr.mxu0 0.0
    %112 = vmatpush1.msra.mxu0 0.0
    %113 = vmatprep.subr.mxu0 0.0
    %114 = vmatpush1.msra.mxu0 0.0
    %115 = vmatprep.subr.mxu0 0.0
    %116 = vmatpush1.msra.mxu0 0.0
    %117 = vmatprep.subr.mxu0 0.0
    %118 = vmatpush1.msra.mxu0 0.0
    %119 = vmatprep.subr.mxu0 0.0
    %120 = vmatpush1.msra.mxu0 0.0
    %121 = vmatprep.subr.mxu0 0.0
    %122 = vmatpush1.msra.mxu0 0.0
    %123 = vmatprep.subr.mxu0 0.0
    %124 = vmatpush1.msra.mxu0 0.0
    %125 = vmatprep.subr.mxu0 0.0
    %126 = vmatpush1.msra.mxu0 0.0
    %127 = vmatprep.subr.mxu0 0.0
    %128 = vmatpush1.msra.mxu0 0.0
    %129 = vmatprep.subr.mxu0 0.0
    %130 = vmatpush1.msra.mxu0 0.0
    %131 = vmatprep.subr.mxu0 0.0
    %132 = vmatpush1.msra.mxu0 0.0
    %133 = vmatprep.subr.mxu0 0.0
    %134 = vmatpush1.msra.mxu0 0.0
    %135 = vmatprep.subr.mxu0 0.0
    %136 = vmatpush1.msra.mxu0 0.0
    %137 = vmatprep.subr.mxu0 0.0
    %138 = vmatpush1.msra.mxu0 0.0
    %139 = vmatprep.subr.mxu0 0.0
    %140 = vmatpush1.msra.mxu0 0.0
    %141 = vmatprep.mubr.f32.mxu0 0.0
    %142 = vmatmul.mubr.f32.gmra.mrb[0].mxu0 %v44
    %v143 = vpop.f32.mrb[0].mxu0
    %v144 = vadd.f32 0.0, %v143
    %v145 = vpop.f32.mrb[0].mxu0
    %146 = vdwg.mxu0
    %147 = vmatprep.subr.mxu0 0.0
    %148 = vmatpush1.msra.mxu0 %v45
    %149 = vmatprep.subr.mxu0 0.0
    %150 = vmatpush1.msra.mxu0 %v46
    %151 = vmatprep.subr.mxu0 0.0
    %152 = vmatpush1.msra.mxu0 %v47
    %153 = vmatprep.subr.mxu0 0.0
    %154 = vmatpush1.msra.mxu0 %v48
    %155 = vmatprep.subr.mxu0 0.0
    %156 = vmatpush1.msra.mxu0 %v49
    %157 = vmatprep.subr.mxu0 0.0
    %158 = vmatpush1.msra.mxu0 %v50
    %159 = vmatprep.subr.mxu0 0.0
    %160 = vmatpush1.msra.mxu0 %v51
    %161 = vmatprep.subr.mxu0 0.0
    %162 = vmatpush1.msra.mxu0 %v52
    %163 = vmatprep.subr.mxu0 0.0
    %164 = vmatpush1.msra.mxu0 %v53
    %165 = vmatprep.subr.mxu0 0.0
    %166 = vmatpush1.msra.mxu0 %v54
    %167 = vmatprep.subr.mxu0 0.0
    %168 = vmatpush1.msra.mxu0 %v55
    %169 = vmatprep.subr.mxu0 0.0
    %170 = vmatpush1.msra.mxu0 %v56
    %171 = vmatprep.subr.mxu0 0.0
    %172 = vmatpush1.msra.mxu0 %v57
    %173 = vmatprep.subr.mxu0 0.0
    %174 = vmatpush1.msra.mxu0 %v58
    %175 = vmatprep.subr.mxu0 0.0
    %176 = vmatpush1.msra.mxu0 %v59
    %177 = vmatprep.subr.mxu0 0.0
    %178 = vmatpush1.msra.mxu0 %v60
    %179 = vmatprep.subr.mxu0 0.0
    %180 = vmatpush1.msra.mxu0 0.0
    %181 = vmatprep.subr.mxu0 0.0
    %182 = vmatpush1.msra.mxu0 0.0
    %183 = vmatprep.subr.mxu0 0.0
    %184 = vmatpush1.msra.mxu0 0.0
    %185 = vmatprep.subr.mxu0 0.0
    %186 = vmatpush1.msra.mxu0 0.0
    %187 = vmatprep.subr.mxu0 0.0
    %188 = vmatpush1.msra.mxu0 0.0
    %189 = vmatprep.subr.mxu0 0.0
    %190 = vmatpush1.msra.mxu0 0.0
    %191 = vmatprep.subr.mxu0 0.0
    %192 = vmatpush1.msra.mxu0 0.0
    %193 = vmatprep.subr.mxu0 0.0
    %194 = vmatpush1.msra.mxu0 0.0
    %195 = vmatprep.subr.mxu0 0.0
    %196 = vmatpush1.msra.mxu0 0.0
    %197 = vmatprep.subr.mxu0 0.0
    %198 = vmatpush1.msra.mxu0 0.0
    %199 = vmatprep.subr.mxu0 0.0
    %200 = vmatpush1.msra.mxu0 0.0
    %201 = vmatprep.subr.mxu0 0.0
    %202 = vmatpush1.msra.mxu0 0.0
    %203 = vmatprep.subr.mxu0 0.0
    %204 = vmatpush1.msra.mxu0 0.0
    %205 = vmatprep.subr.mxu0 0.0
    %206 = vmatpush1.msra.mxu0 0.0
    %207 = vmatprep.subr.mxu0 0.0
    %208 = vmatpush1.msra.mxu0 0.0
    %209 = vmatprep.subr.mxu0 0.0
    %210 = vmatpush1.msra.mxu0 0.0
    %211 = vmatprep.mubr.f32.mxu0 0.0
    %212 = vmatmul.mubr.f32.gmra.mrb[0].mxu0 %v40
    %v213 = vpop.f32.mrb[0].mxu0
    %v214 = vadd.f32 %v144, %v213
    %v215 = vpop.f32.mrb[0].mxu0
    %216 = vdwg.mxu0
    %v217 = vstv %s36
    %v218 = vadd.f32 %v214, %v217
    %vm219 = vcmask 24576
    %220 = vst.msk [vmem:[#allocation5] sm:$0x1] %vm219, %v218
    // Predicated region
    $region26: #{tpu_custom_call.1} parent=1 // pred_check
      _
    $region27: #{tpu_custom_call.1} parent=1 // pred_check_branch
      %222 = sbr.rel (0) target = $region29
    $region28: #{tpu_custom_call.1} parent=1 // pred_region
      %s224 = ssub.s32 16, 16
      %225 = vsyncadd [#allocation3], %s224
      %s227 = sshll.u32 [#allocation5], 4
      %s228 = int_to_ptr.vmem [resolvable:$true] %s227
      %230 = dma.vmem_to_hbm [thread:$0]  %s228, 16, %s5, [#allocation3]
    $region29: #{tpu_custom_call.1} parent=1 // pred_fallthru
      _
    // Predicated region
    $region30: #{tpu_custom_call.1} parent=1 // pred_check
      _
    $region31: #{tpu_custom_call.1} parent=1 // pred_check_branch
      %232 = sbr.rel (0) target = $region33
    $region32: #{tpu_custom_call.1} parent=1 // pred_region
      %233 = dma.done [#allocation3], 16
    $region33: #{tpu_custom_call.1} parent=1 // pred_fallthru
      _
    %234 = vsyncpa [#allocation3], 1
    %235 = vsyncpa [#allocation4], 1

</llo_original>
